<compile_context>
chip_gen: v5e
topology: v5e:2x2
jax: 0.10.0
libtpu: 0.0.40
codegen_flags: <defaults>
</compile_context>

<pallas_src>
import jax
import jax.numpy as jnp
from jax.experimental import pallas as pl
from jax.experimental.pallas import tpu as pltpu


# --- activation dictionary mirroring the PyTorch module (jnp equivalents) ---------
_ACTIVATIONS = {
    "relu": lambda x: jnp.maximum(x, 0.0),
    "sigmoid": jax.nn.sigmoid,
    "selu": jax.nn.selu,
    "softmax": lambda x: jax.nn.softmax(x, axis=-1),
}

_LANE = 128


def _round_up(x, m):
    return ((x + m - 1) // m) * m


def _make_mlp_kernel(num_layers, activation, d_pad, true_dims):
    """Fused MLP kernel over one batch tile.

    Kernel signature: (x_ref, w_stack_ref, b_stack_ref, o_ref)
      x_ref:        [TB, D_pad]            f32 activations tile
      w_stack_ref:  [L, D_pad, D_pad]      weights (f32 or bf16), zero-padded
      b_stack_ref:  [L, D_pad]             f32 biases, zero-padded
      o_ref:        [TB, D_pad]            f32 output slab (lane-dense)
    Hidden layers use `activation`; the final layer uses sigmoid (as in Actor).
    """
    act = _ACTIVATIONS[activation]
    mask_for_softmax = activation == "softmax"

    def kernel(x_ref, w_ref, b_ref, o_ref):
        h = x_ref[...]  # already f32; no redundant cast
        for layer in range(num_layers):
            w = w_ref[layer]                       # [D_pad, D_pad] (static index)
            lhs = h.astype(w.dtype)                # bf16 path only if weights are bf16
            h = jnp.dot(lhs, w, preferred_element_type=jnp.float32)
            h = h + b_ref[layer:layer + 1, :]      # [1, D_pad] broadcast, f32
            if layer < num_layers - 1:
                if mask_for_softmax and true_dims[layer + 1] < d_pad:
                    # Padded lanes carry logit 0; exclude them from the softmax sum.
                    lane = jax.lax.broadcasted_iota(jnp.int32, h.shape, 1)
                    h = jnp.where(lane < true_dims[layer + 1], h, -1e30)
                h = act(h)
            else:
                h = jax.nn.sigmoid(h)              # Actor always ends with sigmoid
        o_ref[...] = h.astype(o_ref.dtype)

    return kernel


def actor_forward(x, weights, biases, activation="relu",
                  weight_dtype=jnp.float32, block_b=512):
    """Run the fused Actor MLP as a single Pallas call.

    x:        [B, input_dim]  float32
    weights:  list of [in_i, out_i] float32 arrays (transposed vs. PyTorch layout)
    biases:   list of [out_i]       float32 arrays
    weight_dtype: jnp.float32 or jnp.bfloat16 (bf16 halves HBM weight traffic on
                  v6e/v7x; accumulation stays f32).
    """
    num_layers = len(weights)
    B, input_dim = x.shape
    out_dim = weights[-1].shape[1]

    # True layer dims and a single MXU/lane-aligned padded width for everything.
    dims = [input_dim] + [w.shape[1] for w in weights]
    d_pad = max(_round_up(d, _LANE) for d in dims)

    # Pack all parameters into two arrays (2 DMAs total), zero-padded once on host.
    w_stack = jnp.zeros((num_layers, d_pad, d_pad), weight_dtype)
    b_stack = jnp.zeros((num_layers, d_pad), jnp.float32)
    for i, (w, b) in enumerate(zip(weights, biases)):
        w_stack = w_stack.at[i, :w.shape[0], :w.shape[1]].set(w.astype(weight_dtype))
        b_stack = b_stack.at[i, :b.shape[0]].set(b.astype(jnp.float32))

    # Batch tiling: TB rows per grid step (sublane-aligned), batch zero-padded to TB.
    tb = min(block_b, _round_up(B, 8))
    b_pad = _round_up(B, tb)
    x_p = jnp.zeros((b_pad, d_pad), jnp.float32).at[:B, :input_dim].set(
        x.astype(jnp.float32))

    kernel = _make_mlp_kernel(num_layers, activation, d_pad, dims)

    out_padded = pl.pallas_call(
        kernel,
        out_shape=jax.ShapeDtypeStruct((b_pad, d_pad), jnp.float32),
        grid=(pl.cdiv(b_pad, tb),),
        in_specs=[
            pl.BlockSpec((tb, d_pad), lambda i: (i, 0)),                     # x tile
            pl.BlockSpec((num_layers, d_pad, d_pad), lambda i: (0, 0, 0)),   # weights
            pl.BlockSpec((num_layers, d_pad), lambda i: (0, 0)),             # biases
        ],
        out_specs=pl.BlockSpec((tb, d_pad), lambda i: (i, 0)),
        compiler_params=pltpu.CompilerParams(
            dimension_semantics=("parallel",),        # megacore split on v7x
            vmem_limit_bytes=32 * 1024 * 1024,        # safe for v7x's 64 MiB VMEM
        ),
    )(x_p, w_stack, b_stack)

    return out_padded[:B, :out_dim]


def init_actor_params(key, input_dim, h_dim, output_dim, layer_num):
    """Deterministic init matching nn.Linear default: U(-1/sqrt(fan_in), 1/sqrt(fan_in)).

    Returns weights as [in, out] (transposed from PyTorch's [out, in]) and biases [out].
    """
    dims = [input_dim] + [h_dim] * (layer_num - 1) + [output_dim]
    weights, biases = [], []
    for i in range(layer_num):
        fan_in, fan_out = dims[i], dims[i + 1]
        key, wk, bk = jax.random.split(key, 3)
        bound = 1.0 / jnp.sqrt(float(fan_in))
        w = jax.random.uniform(wk, (fan_in, fan_out), jnp.float32, -bound, bound)
        b = jax.random.uniform(bk, (fan_out,), jnp.float32, -bound, bound)
        weights.append(w)
        biases.append(b)
    return weights, biases


def actor_reference(x, weights, biases, activation="relu"):
    """Pure-JAX reference of the same forward pass (for correctness check)."""
    act = _ACTIVATIONS[activation]
    h = x
    n = len(weights)
    for i, (w, b) in enumerate(zip(weights, biases)):
        h = h @ w + b
        h = act(h) if i < n - 1 else jax.nn.sigmoid(h)
    return h


if __name__ == "__main__":
    # Actor(input_dim=16, h_dim=32, output_dim=8, layer_num=3, activation='relu')
    # applied to x of shape [batch=8, 16].
    input_dim, h_dim, output_dim, layer_num = 16, 32, 8, 3
    batch = 8

    key = jax.random.PRNGKey(0)
    key, xk = jax.random.split(key)
    x = jax.random.normal(xk, (batch, input_dim), jnp.float32)

    weights, biases = init_actor_params(key, input_dim, h_dim, output_dim, layer_num)
    ref = actor_reference(x, weights, biases, activation="relu")

    # f32 weights (exact path, v5e-friendly).
    out_f32 = actor_forward(x, weights, biases, activation="relu",
                            weight_dtype=jnp.float32)
    out_f32 = jax.block_until_ready(out_f32)
    assert out_f32.shape == (batch, output_dim)
    assert jnp.allclose(out_f32, ref, atol=1e-5, rtol=1e-5), "f32 mismatch vs. reference"

    # bf16 weight storage / MXU operands, f32 accumulation (v6e/v7x path).
    out_bf16 = actor_forward(x, weights, biases, activation="relu",
                             weight_dtype=jnp.bfloat16)
    out_bf16 = jax.block_until_ready(out_bf16)
    assert jnp.allclose(out_bf16, ref, atol=5e-2, rtol=5e-2), "bf16 mismatch vs. reference"

    print("KERNEL_OK")
</pallas_src>

<mosaic_0001>
module attributes {stable_mosaic.version = 11 : i64} {
  func.func @kernel(%arg0: i32, %arg1: memref<8x128xf32, #tpu.memory_space<vmem>>, %arg2: memref<3x128x128xf32, #tpu.memory_space<vmem>>, %arg3: memref<3x128xf32, #tpu.memory_space<vmem>>, %arg4: memref<8x128xf32, #tpu.memory_space<vmem>>) attributes {dimension_semantics = [#tpu.dimension_semantics<parallel>], iteration_bounds = array<i64: 1>, scalar_prefetch = 0 : i64, scratch_operands = 0 : i64, tpu.core_type = #tpu.core_type<tc>, window_params = [{transform_indices = @transform_0, window_bounds = array<i64: 8, 128>}, {pipeline_mode = #tpu.pipeline_mode<synchronous>, transform_indices = @transform_1, window_bounds = array<i64: 3, 128, 128>}, {pipeline_mode = #tpu.pipeline_mode<synchronous>, transform_indices = @transform_2, window_bounds = array<i64: 3, 128>}, {transform_indices = @transform_3, window_bounds = array<i64: 8, 128>}]} {
    %c0 = arith.constant 0 : index
    %c0_0 = arith.constant 0 : index
    %0 = vector.load %arg1[%c0, %c0_0] : memref<8x128xf32, #tpu.memory_space<vmem>>, vector<8x128xf32>
    %c0_1 = arith.constant 0 : index
    %c0_2 = arith.constant 0 : index
    %c0_3 = arith.constant 0 : index
    %1 = vector.load %arg2[%c0_1, %c0_2, %c0_3] : memref<3x128x128xf32, #tpu.memory_space<vmem>>, vector<1x128x128xf32>
    %2 = vector.shape_cast %1 : vector<1x128x128xf32> to vector<128x128xf32>
    %cst = arith.constant dense<0.000000e+00> : vector<8x128xf32>
    %3 = tpu.matmul %0, %2, %cst {dimension_numbers = #tpu.dot_dimension_numbers<[1], [0], [0], [1], [0, 0, 1, 1], [], []>} : vector<8x128xf32>, vector<128x128xf32>, vector<8x128xf32> -> vector<8x128xf32>
    %c0_4 = arith.constant 0 : index
    %c0_5 = arith.constant 0 : index
    %4 = vector.load %arg3[%c0_4, %c0_5] : memref<3x128xf32, #tpu.memory_space<vmem>>, vector<1x128xf32>
    %5 = vector.broadcast %4 : vector<1x128xf32> to vector<8x128xf32>
    %6 = arith.addf %3, %5 : vector<8x128xf32>
    %cst_6 = arith.constant 0.000000e+00 : f32
    %7 = vector.broadcast %cst_6 : f32 to vector<8x128xf32>
    %8 = arith.maximumf %6, %7 : vector<8x128xf32>
    %c1 = arith.constant 1 : index
    %c0_7 = arith.constant 0 : index
    %c0_8 = arith.constant 0 : index
    %9 = vector.load %arg2[%c1, %c0_7, %c0_8] : memref<3x128x128xf32, #tpu.memory_space<vmem>>, vector<1x128x128xf32>
    %10 = vector.shape_cast %9 : vector<1x128x128xf32> to vector<128x128xf32>
    %cst_9 = arith.constant dense<0.000000e+00> : vector<8x128xf32>
    %11 = tpu.matmul %8, %10, %cst_9 {dimension_numbers = #tpu.dot_dimension_numbers<[1], [0], [0], [1], [0, 0, 1, 1], [], []>} : vector<8x128xf32>, vector<128x128xf32>, vector<8x128xf32> -> vector<8x128xf32>
    %c1_10 = arith.constant 1 : index
    %c0_11 = arith.constant 0 : index
    %12 = vector.load %arg3[%c1_10, %c0_11] : memref<3x128xf32, #tpu.memory_space<vmem>>, vector<1x128xf32>
    %13 = vector.broadcast %12 : vector<1x128xf32> to vector<8x128xf32>
    %14 = arith.addf %11, %13 : vector<8x128xf32>
    %cst_12 = arith.constant 0.000000e+00 : f32
    %15 = vector.broadcast %cst_12 : f32 to vector<8x128xf32>
    %16 = arith.maximumf %14, %15 : vector<8x128xf32>
    %c2 = arith.constant 2 : index
    %c0_13 = arith.constant 0 : index
    %c0_14 = arith.constant 0 : index
    %17 = vector.load %arg2[%c2, %c0_13, %c0_14] : memref<3x128x128xf32, #tpu.memory_space<vmem>>, vector<1x128x128xf32>
    %18 = vector.shape_cast %17 : vector<1x128x128xf32> to vector<128x128xf32>
    %cst_15 = arith.constant dense<0.000000e+00> : vector<8x128xf32>
    %19 = tpu.matmul %16, %18, %cst_15 {dimension_numbers = #tpu.dot_dimension_numbers<[1], [0], [0], [1], [0, 0, 1, 1], [], []>} : vector<8x128xf32>, vector<128x128xf32>, vector<8x128xf32> -> vector<8x128xf32>
    %c2_16 = arith.constant 2 : index
    %c0_17 = arith.constant 0 : index
    %20 = vector.load %arg3[%c2_16, %c0_17] : memref<3x128xf32, #tpu.memory_space<vmem>>, vector<1x128xf32>
    %21 = vector.broadcast %20 : vector<1x128xf32> to vector<8x128xf32>
    %22 = arith.addf %19, %21 : vector<8x128xf32>
    %23 = arith.negf %22 : vector<8x128xf32>
    %24 = math.exp %23 : vector<8x128xf32>
    %cst_18 = arith.constant 1.000000e+00 : f32
    %25 = vector.broadcast %cst_18 : f32 to vector<8x128xf32>
    %26 = arith.addf %25, %24 : vector<8x128xf32>
    %27 = arith.divf %25, %26 : vector<8x128xf32>
    %c0_19 = arith.constant 0 : index
    %c0_20 = arith.constant 0 : index
    %28 = vector.load %arg4[%c0_19, %c0_20] : memref<8x128xf32, #tpu.memory_space<vmem>>, vector<8x128xf32>
    tpu.vector_store %arg4[%c0_19, %c0_20], %27 {strides = array<i32>} : memref<8x128xf32, #tpu.memory_space<vmem>>, vector<8x128xf32>,
    return
  }
  func.func @transform_0(%arg0: i32) -> (i32, i32) {
    %c0_i32 = arith.constant 0 : i32
    %c0_i32_0 = arith.constant 0 : i32
    return %arg0, %c0_i32 : i32, i32
  }
  func.func @transform_1(%arg0: i32) -> (i32, i32, i32) {
    %c0_i32 = arith.constant 0 : i32
    %c0_i32_0 = arith.constant 0 : i32
    %c0_i32_1 = arith.constant 0 : i32
    %c0_i32_2 = arith.constant 0 : i32
    return %c0_i32, %c0_i32_0, %c0_i32_1 : i32, i32, i32
  }
  func.func @transform_2(%arg0: i32) -> (i32, i32) {
    %c0_i32 = arith.constant 0 : i32
    %c0_i32_0 = arith.constant 0 : i32
    %c0_i32_1 = arith.constant 0 : i32
    return %c0_i32, %c0_i32_0 : i32, i32
  }
  func.func @transform_3(%arg0: i32) -> (i32, i32) {
    %c0_i32 = arith.constant 0 : i32
    %c0_i32_0 = arith.constant 0 : i32
    return %arg0, %c0_i32 : i32, i32
  }
}

</mosaic_0001>

<llo_original>
// kernel: tpu_custom_call.1
$region0: #{tpu_custom_call.1}
  #allocation0 [shape = 'u32[]', space=smem, size = 0x4, offset = 0x4, fixed_abs, tag = 'smem constant byte address 0x4 - core index']
  #allocation1 [shape = 'u32[72,128]{1,0:T(1,128)}', space=vmem, size = 0x9000, scoped, tag = 'internal scratch']
  %s0 = inlined_call_operand.hbm [shape: f32[8,128], index: 0, kind: input, shape index: {}]
  %s1 = inlined_call_operand.hbm [shape: f32[3,128,128], index: 1, kind: input, shape index: {}]
  %s2 = inlined_call_operand.hbm [shape: f32[3,128], index: 2, kind: input, shape index: {}]
  %s3 = inlined_call_operand.hbm [shape: f32[8,128], index: 3, kind: output, shape index: {}]
  %s4 = sld [smem:[#allocation0]]
  $region34: #{tpu_custom_call.1} parent=0
    _
  %s6 = ssub.s32 1, %s4
  %s7 = scalar_select 0, %s6, %s4
  $region1: #{tpu_custom_call.1} parent=0
    #allocation2 [shape = 'u8[4096]{0}', space=vmem, size = 0x1000, scoped, tag = 'input window, operand 0, single buffered']
    #allocation3 [shape = 's32[1]{0}', space=sflag, size = 0x4, scoped, tag = 'scoped memory for tpu_custom_call.1']
    #allocation4 [shape = 's32[1]{0}', space=sflag, size = 0x4, scoped, tag = 'scoped memory for tpu_custom_call.1']
    #allocation5 [shape = 'u8[196608]{0}', space=vmem, size = 0x30000, scoped, tag = 'input window, operand 1, single buffered']
    #allocation6 [shape = 's32[1]{0}', space=sflag, size = 0x4, scoped, tag = 'scoped memory for tpu_custom_call.1']
    #allocation7 [shape = 'u8[2048]{0}', space=vmem, size = 0x800, scoped, tag = 'input window, operand 2, single buffered']
    #allocation8 [shape = 'u8[4096]{0}', space=vmem, size = 0x1000, scoped, tag = 'output window, operand 0, single buffered']
    %8 = vsyncpa [#allocation3], 0
    %9 = vsyncpa [#allocation6], 0
    %10 = vsyncpa [#allocation4], 0
    // Predicated region
    $region2: #{tpu_custom_call.1} parent=1 // pred_check
      _
    $region3: #{tpu_custom_call.1} parent=1 // pred_check_branch
      %12 = sbr.rel (0) target = $region5
    $region4: #{tpu_custom_call.1} parent=1 // pred_region
      %14 = vsyncadd [#allocation3], 0
      %s16 = sshll.u32 %s0, 4
      %s17 = int_to_ptr.hbm [resolvable:$true] %s16
      %s18 = sshll.u32 [#allocation2], 4
      %s19 = int_to_ptr.vmem [resolvable:$true] %s18
      %21 = dma.hbm_to_vmem [thread:$0]  %s17, 128, %s19, [#allocation3]
    $region5: #{tpu_custom_call.1} parent=1 // pred_fallthru
      _
    // Predicated region
    $region6: #{tpu_custom_call.1} parent=1 // pred_check
      _
    $region7: #{tpu_custom_call.1} parent=1 // pred_check_branch
      %23 = sbr.rel (0) target = $region9
    $region8: #{tpu_custom_call.1} parent=1 // pred_region
      %25 = vsyncadd [#allocation6], 0
      %s26 = sshll.u32 %s1, 4
      %s27 = int_to_ptr.hbm [resolvable:$true] %s26
      %s28 = sshll.u32 [#allocation5], 4
      %s29 = int_to_ptr.vmem [resolvable:$true] %s28
      %34 = dma.hbm_to_vmem [thread:$0]  %s27, 6144, %s29, [#allocation6], 128, 128, 8
    $region9: #{tpu_custom_call.1} parent=1 // pred_fallthru
      _
    // Predicated region
    $region10: #{tpu_custom_call.1} parent=1 // pred_check
      _
    $region11: #{tpu_custom_call.1} parent=1 // pred_check_branch
      %36 = sbr.rel (0) target = $region13
    $region12: #{tpu_custom_call.1} parent=1 // pred_region
      %38 = vsyncadd [#allocation6], 0
      %s40 = sshll.u32 %s2, 4
      %s41 = int_to_ptr.hbm [resolvable:$true] %s40
      %s42 = sshll.u32 [#allocation7], 4
      %s43 = int_to_ptr.vmem [resolvable:$true] %s42
      %45 = dma.hbm_to_vmem [thread:$0]  %s41, 64, %s43, [#allocation6]
    $region13: #{tpu_custom_call.1} parent=1 // pred_fallthru
      _
    // Predicated region
    $region14: #{tpu_custom_call.1} parent=1 // pred_check
      _
    $region15: #{tpu_custom_call.1} parent=1 // pred_check_branch
      %47 = sbr.rel (0) target = $region17
    $region16: #{tpu_custom_call.1} parent=1 // pred_region
      %49 = dma.done [#allocation3], 128
    $region17: #{tpu_custom_call.1} parent=1 // pred_fallthru
      _
    // Predicated region
    $region18: #{tpu_custom_call.1} parent=1 // pred_check
      _
    $region19: #{tpu_custom_call.1} parent=1 // pred_check_branch
      %51 = sbr.rel (0) target = $region21
    $region20: #{tpu_custom_call.1} parent=1 // pred_region
      %53 = dma.done [#allocation6], 6144
    $region21: #{tpu_custom_call.1} parent=1 // pred_fallthru
      _
    // Predicated region
    $region22: #{tpu_custom_call.1} parent=1 // pred_check
      _
    $region23: #{tpu_custom_call.1} parent=1 // pred_check_branch
      %55 = sbr.rel (0) target = $region25
    $region24: #{tpu_custom_call.1} parent=1 // pred_region
      %57 = dma.done [#allocation6], 64
    $region25: #{tpu_custom_call.1} parent=1 // pred_fallthru
      _
    %v58 = vld [vmem:[#allocation2] sm:$0xff]
    %v59 = vld [vmem:[#allocation5] sm:$0xff]
    %v60 = vld [vmem:[#allocation5 + $0x8] sm:$0xff]
    %v61 = vld [vmem:[#allocation5 + $0x10] sm:$0xff]
    %v62 = vld [vmem:[#allocation5 + $0x18] sm:$0xff]
    %v63 = vld [vmem:[#allocation5 + $0x20] sm:$0xff]
    %v64 = vld [vmem:[#allocation5 + $0x28] sm:$0xff]
    %v65 = vld [vmem:[#allocation5 + $0x30] sm:$0xff]
    %v66 = vld [vmem:[#allocation5 + $0x38] sm:$0xff]
    %v67 = vld [vmem:[#allocation5 + $0x40] sm:$0xff]
    %v68 = vld [vmem:[#allocation5 + $0x48] sm:$0xff]
    %v69 = vld [vmem:[#allocation5 + $0x50] sm:$0xff]
    %v70 = vld [vmem:[#allocation5 + $0x58] sm:$0xff]
    %v71 = vld [vmem:[#allocation5 + $0x60] sm:$0xff]
    %v72 = vld [vmem:[#allocation5 + $0x68] sm:$0xff]
    %v73 = vld [vmem:[#allocation5 + $0x70] sm:$0xff]
    %v74 = vld [vmem:[#allocation5 + $0x78] sm:$0xff]
    %v75 = vld [vmem:[#allocation7] sm:$0x1]
    %v76 = vperm.slane %v75, 0
    %77 = vmatpush.msra.mxu0 %v74
    %78 = vmatpush.msra.mxu0 %v73
    %79 = vmatpush.msra.mxu0 %v72
    %80 = vmatpush.msra.mxu0 %v71
    %81 = vmatpush.msra.mxu0 %v70
    %82 = vmatpush.msra.mxu0 %v69
    %83 = vmatpush.msra.mxu0 %v68
    %84 = vmatpush.msra.mxu0 %v67
    %85 = vmatpush.msra.mxu0 %v66
    %86 = vmatpush.msra.mxu0 %v65
    %87 = vmatpush.msra.mxu0 %v64
    %88 = vmatpush.msra.mxu0 %v63
    %89 = vmatpush.msra.mxu0 %v62
    %90 = vmatpush.msra.mxu0 %v61
    %91 = vmatpush.msra.mxu0 %v60
    %92 = vmatpush.msra.mxu0 %v59
    %93 = vmatmul.f32.gmra.mxu0 %v58
    %v94 = vpop.f32.mrf.mxu0
    %v95 = vadd.f32 %v76, %v94
    %96 = vdwg.mxu0
    %v97 = vmax.f32 %v95, 0.0
    %s98 = scalar_lea.vmem [#allocation5], 128
    %v99 = vld [vmem:[%s98] sm:$0xff]
    %v100 = vld [vmem:[%s98 + $0x8] sm:$0xff]
    %v101 = vld [vmem:[%s98 + $0x10] sm:$0xff]
    %v102 = vld [vmem:[%s98 + $0x18] sm:$0xff]
    %v103 = vld [vmem:[%s98 + $0x20] sm:$0xff]
    %v104 = vld [vmem:[%s98 + $0x28] sm:$0xff]
    %v105 = vld [vmem:[%s98 + $0x30] sm:$0xff]
    %v106 = vld [vmem:[%s98 + $0x38] sm:$0xff]
    %v107 = vld [vmem:[%s98 + $0x40] sm:$0xff]
    %v108 = vld [vmem:[%s98 + $0x48] sm:$0xff]
    %v109 = vld [vmem:[%s98 + $0x50] sm:$0xff]
    %v110 = vld [vmem:[%s98 + $0x58] sm:$0xff]
    %v111 = vld [vmem:[%s98 + $0x60] sm:$0xff]
    %v112 = vld [vmem:[%s98 + $0x68] sm:$0xff]
    %v113 = vld [vmem:[%s98 + $0x70] sm:$0xff]
    %v114 = vld [vmem:[%s98 + $0x78] sm:$0xff]
    %v115 = vld [vmem:[#allocation7 + $0x1] sm:$0x1]
    %v116 = vperm.slane %v115, 0
    %117 = vmatpush.msra.mxu0 %v114
    %118 = vmatpush.msra.mxu0 %v113
    %119 = vmatpush.msra.mxu0 %v112
    %120 = vmatpush.msra.mxu0 %v111
    %121 = vmatpush.msra.mxu0 %v110
    %122 = vmatpush.msra.mxu0 %v109
    %123 = vmatpush.msra.mxu0 %v108
    %124 = vmatpush.msra.mxu0 %v107
    %125 = vmatpush.msra.mxu0 %v106
    %126 = vmatpush.msra.mxu0 %v105
    %127 = vmatpush.msra.mxu0 %v104
    %128 = vmatpush.msra.mxu0 %v103
    %129 = vmatpush.msra.mxu0 %v102
    %130 = vmatpush.msra.mxu0 %v101
    %131 = vmatpush.msra.mxu0 %v100
    %132 = vmatpush.msra.mxu0 %v99
    %133 = vmatmul.f32.gmra.mxu0 %v97
    %v134 = vpop.f32.mrf.mxu0
    %v135 = vadd.f32 %v116, %v134
    %136 = vdwg.mxu0
    %v137 = vmax.f32 %v135, 0.0
    %s138 = scalar_lea.vmem [#allocation5], 256
    %v139 = vld [vmem:[%s138] sm:$0xff]
    %v140 = vld [vmem:[%s138 + $0x8] sm:$0xff]
    %v141 = vld [vmem:[%s138 + $0x10] sm:$0xff]
    %v142 = vld [vmem:[%s138 + $0x18] sm:$0xff]
    %v143 = vld [vmem:[%s138 + $0x20] sm:$0xff]
    %v144 = vld [vmem:[%s138 + $0x28] sm:$0xff]
    %v145 = vld [vmem:[%s138 + $0x30] sm:$0xff]
    %v146 = vld [vmem:[%s138 + $0x38] sm:$0xff]
    %v147 = vld [vmem:[%s138 + $0x40] sm:$0xff]
    %v148 = vld [vmem:[%s138 + $0x48] sm:$0xff]
    %v149 = vld [vmem:[%s138 + $0x50] sm:$0xff]
    %v150 = vld [vmem:[%s138 + $0x58] sm:$0xff]
    %v151 = vld [vmem:[%s138 + $0x60] sm:$0xff]
    %v152 = vld [vmem:[%s138 + $0x68] sm:$0xff]
    %v153 = vld [vmem:[%s138 + $0x70] sm:$0xff]
    %v154 = vld [vmem:[%s138 + $0x78] sm:$0xff]
    %v155 = vld [vmem:[#allocation7 + $0x2] sm:$0x1]
    %v156 = vperm.slane %v155, 0
    %157 = vmatpush.msra.mxu0 %v154
    %158 = vmatpush.msra.mxu0 %v153
    %159 = vmatpush.msra.mxu0 %v152
    %160 = vmatpush.msra.mxu0 %v151
    %161 = vmatpush.msra.mxu0 %v150
    %162 = vmatpush.msra.mxu0 %v149
    %163 = vmatpush.msra.mxu0 %v148
    %164 = vmatpush.msra.mxu0 %v147
    %165 = vmatpush.msra.mxu0 %v146
    %166 = vmatpush.msra.mxu0 %v145
    %167 = vmatpush.msra.mxu0 %v144
    %168 = vmatpush.msra.mxu0 %v143
    %169 = vmatpush.msra.mxu0 %v142
    %170 = vmatpush.msra.mxu0 %v141
    %171 = vmatpush.msra.mxu0 %v140
    %172 = vmatpush.msra.mxu0 %v139
    %173 = vmatmul.f32.gmra.mxu0 %v137
    %v174 = vpop.f32.mrf.mxu0
    %v175 = vadd.f32 %v156, %v174
    %176 = vdwg.mxu0
    %v177 = vxor.u32 %v175, 2147483648
    %v178 = vmul.f32 %v177, 1.442695
    %v179 = vpow.pop %v178
    %v180 = vadd.f32 %v179, 1.0
    %v181 = vrcp.pop %v180
    %v182 = vmul.f32 %v180, %v181
    %v183 = vsub.f32 1.0, %v182
    %v184 = vmul.f32 %v181, %v183
    %v185 = vadd.f32 %v181, %v184
    %vm186 = vweird.f32 %v180
    %vm187 = vweird.f32 %v181
    %vm188 = vmor %vm186, %vm187
    %v189 = vsel %vm188, %v181, %v185
    %v190 = vand.u32 2147483647, %v180
    %vm191 = vcmp.eq.f32.partialorder %v190, 8.507059e+37
    %v192 = vand.u32 %v180, 2147483648
    %v193 = vor.u32 1.1754944e-38, %v192
    %v194 = vsel %vm191, %v193, %v189
    %v195 = vmul.f32 1.0, %v194
    %196 = vst [vmem:[#allocation8] sm:$0xff] %v195
    // Predicated region
    $region26: #{tpu_custom_call.1} parent=1 // pred_check
      _
    $region27: #{tpu_custom_call.1} parent=1 // pred_check_branch
      %198 = sbr.rel (0) target = $region29
    $region28: #{tpu_custom_call.1} parent=1 // pred_region
      %200 = vsyncadd [#allocation4], 0
      %s202 = sshll.u32 [#allocation8], 4
      %s203 = int_to_ptr.vmem [resolvable:$true] %s202
      %s204 = sshll.u32 %s3, 4
      %s205 = int_to_ptr.hbm [resolvable:$true] %s204
      %207 = dma.vmem_to_hbm [thread:$0]  %s203, 128, %s205, [#allocation4]
    $region29: #{tpu_custom_call.1} parent=1 // pred_fallthru
      _
    // Predicated region
    $region30: #{tpu_custom_call.1} parent=1 // pred_check
      _
    $region31: #{tpu_custom_call.1} parent=1 // pred_check_branch
      %209 = sbr.rel (0) target = $region33
    $region32: #{tpu_custom_call.1} parent=1 // pred_region
      %211 = dma.done [#allocation4], 128
    $region33: #{tpu_custom_call.1} parent=1 // pred_fallthru
      _
    %212 = vsyncpa [#allocation3], 1
    %213 = vsyncpa [#allocation6], 1
    %214 = vsyncpa [#allocation4], 1

</llo_original>
